<compile_context>
chip_gen: v6e
topology: v6e:2x2x1
jax: 0.10.0
libtpu: 0.0.40
codegen_flags: <defaults>
</compile_context>

<pallas_src>
import functools
import math

import jax
import jax.numpy as jnp
from jax.experimental import pallas as pl
from jax.experimental.pallas import tpu as pltpu


# ------------------------------ tiling helpers ----------------------------- #

_EW_LANES = 512          # lane width for flattened elementwise tiles
_EW_TILE_ROWS = 256      # sublane rows per elementwise tile (multiple of 16)
_MAX_LANE_TILE = 2048    # lane tile for sublane-reduction path
_MAX_ROW_TILE = 512      # row tile for lane-reduction path
_GA_LANES = 512          # global-argmax lane width
_GA_TILE_ROWS = 256      # global-argmax rows per tile


def _round_up(n, m):
    return ((n + m - 1) // m) * m


def _prod(xs):
    return int(math.prod(xs)) if xs else 1


# ----------------------------- elementwise kernels ------------------------- #

def _sigmoid_kernel(x_ref, o_ref):
    # f32 compute path (required on v5e; no-op for f32 inputs).
    x = x_ref[...].astype(jnp.float32)
    o_ref[...] = jax.nn.sigmoid(x).astype(o_ref.dtype)


def _tanh_kernel(x_ref, o_ref):
    o_ref[...] = jnp.tanh(x_ref[...].astype(jnp.float32)).astype(o_ref.dtype)


def _elementwise_call(kernel, x):
    shp, dt = x.shape, x.dtype
    total = int(x.size)
    if total == 0:
        return x
    flat = x.reshape(-1)
    cols = _EW_LANES
    rows = pl.cdiv(total, cols)
    tile_r = _EW_TILE_ROWS if rows >= _EW_TILE_ROWS else _round_up(rows, 16)
    rows_p = _round_up(rows, tile_r)
    pad = rows_p * cols - total
    if pad:
        flat = jnp.pad(flat, (0, pad))
    x2 = flat.reshape(rows_p, cols)
    out = pl.pallas_call(
        kernel,
        out_shape=jax.ShapeDtypeStruct((rows_p, cols), dt),
        grid=(rows_p // tile_r,),
        in_specs=[pl.BlockSpec((tile_r, cols), lambda i: (i, 0))],
        out_specs=pl.BlockSpec((tile_r, cols), lambda i: (i, 0)),
        compiler_params=pltpu.CompilerParams(
            dimension_semantics=("parallel",)),
    )(x2)
    return out.reshape(-1)[:total].reshape(shp)


# ----------------------- axis-reduction kernels (axis == 1) ---------------- #
# Blocks are either (tile_r, C)       -> reduce over lanes   (axis=1)
#                or (1, C, tile_t)    -> reduce over sublanes (axis=1)

def _softmax_kernel(axis, x_ref, o_ref):
    x = x_ref[...].astype(jnp.float32)
    m = jnp.max(x, axis=axis, keepdims=True)
    e = jnp.exp(x - m)
    s = jnp.sum(e, axis=axis, keepdims=True)
    o_ref[...] = (e * pl.reciprocal(s)).astype(o_ref.dtype)


def _logsoftmax_kernel(axis, x_ref, o_ref):
    x = x_ref[...].astype(jnp.float32)
    m = jnp.max(x, axis=axis, keepdims=True)
    shifted = x - m
    lse = jnp.log(jnp.sum(jnp.exp(shifted), axis=axis, keepdims=True))
    o_ref[...] = (shifted - lse).astype(o_ref.dtype)


def _argmax_kernel(axis, x_ref, o_ref):
    # argmax over `axis`; first index wins ties; NaN treated as max (NaN-aware).
    x = x_ref[...]
    m = jnp.max(x, axis=axis, keepdims=True)
    idx = jax.lax.broadcasted_iota(jnp.int32, x.shape, axis)
    big = jnp.int32(x.shape[axis])
    if jnp.issubdtype(x.dtype, jnp.floating):
        nan_mask = x != x
        has_nan = jnp.max(nan_mask.astype(jnp.float32), axis=axis,
                          keepdims=True) > 0.0
        cand_mask = jnp.where(has_nan, nan_mask, x == m)
    else:
        cand_mask = x == m
    cand = jnp.where(cand_mask, idx, big)
    o_ref[...] = jnp.min(cand, axis=axis, keepdims=True)


def _reduce_dim_call(kernel_fn, x, dim, out_kind):
    """Run a reduce-over-`dim` kernel.  out_kind: 'same' (softmax) | 'index'."""
    ndim = x.ndim
    dim = dim % ndim
    lead = _prod(x.shape[:dim])
    C = int(x.shape[dim])
    trail = _prod(x.shape[dim + 1:])

    if trail > 1:
        # Sublane-reduction path: keep `trail` lane-dense, reduce over C.
        x3 = x.reshape(lead, C, trail)
        tile_t = _MAX_LANE_TILE if trail >= _MAX_LANE_TILE else _round_up(trail, 128)
        trail_p = _round_up(trail, tile_t)
        if trail_p != trail:
            x3 = jnp.pad(x3, ((0, 0), (0, 0), (0, trail_p - trail)))
        grid = (lead, trail_p // tile_t)
        in_spec = pl.BlockSpec((1, C, tile_t), lambda l, t: (l, 0, t))
        if out_kind == 'same':
            out_shape = jax.ShapeDtypeStruct((lead, C, trail_p), x.dtype)
            out_spec = pl.BlockSpec((1, C, tile_t), lambda l, t: (l, 0, t))
        else:
            out_shape = jax.ShapeDtypeStruct((lead, 1, trail_p), jnp.int32)
            out_spec = pl.BlockSpec((1, 1, tile_t), lambda l, t: (l, 0, t))
        out = pl.pallas_call(
            functools.partial(kernel_fn, 1),
            out_shape=out_shape,
            grid=grid,
            in_specs=[in_spec],
            out_specs=out_spec,
            compiler_params=pltpu.CompilerParams(
                dimension_semantics=("parallel", "parallel")),
        )(x3)
        if out_kind == 'same':
            return out[:, :, :trail].reshape(x.shape)
        return out[:, 0, :trail].reshape(x.shape[:dim] + x.shape[dim + 1:])

    # Lane-reduction path (reduce dim is the last axis).
    x2 = x.reshape(lead, C)
    tile_r = _MAX_ROW_TILE if lead >= _MAX_ROW_TILE else _round_up(lead, 16)
    lead_p = _round_up(lead, tile_r)
    if lead_p != lead:
        x2 = jnp.pad(x2, ((0, lead_p - lead), (0, 0)))
    grid = (lead_p // tile_r,)
    in_spec = pl.BlockSpec((tile_r, C), lambda i: (i, 0))
    if out_kind == 'same':
        out_shape = jax.ShapeDtypeStruct((lead_p, C), x.dtype)
        out_spec = pl.BlockSpec((tile_r, C), lambda i: (i, 0))
    else:
        out_shape = jax.ShapeDtypeStruct((lead_p, 1), jnp.int32)
        out_spec = pl.BlockSpec((tile_r, 1), lambda i: (i, 0))
    out = pl.pallas_call(
        functools.partial(kernel_fn, 1),
        out_shape=out_shape,
        grid=grid,
        in_specs=[in_spec],
        out_specs=out_spec,
        compiler_params=pltpu.CompilerParams(
            dimension_semantics=("parallel",)),
    )(x2)
    if out_kind == 'same':
        return out[:lead].reshape(x.shape)
    return out[:lead, 0].reshape(x.shape[:dim] + x.shape[dim + 1:])


# --------------------------- global argmax (dim=None) ---------------------- #

def _global_argmax_kernel(x_ref, o_ref, max_sc, idx_sc):
    i = pl.program_id(0)
    x = x_ref[...]
    rows, cols = x.shape

    def _reduce2d(op, a):
        return op(op(a, axis=1, keepdims=True), axis=0, keepdims=True)

    m = _reduce2d(jnp.max, x)                                   # (1,1) native dt
    flat_idx = (jax.lax.broadcasted_iota(jnp.int32, x.shape, 0) * cols
                + jax.lax.broadcasted_iota(jnp.int32, x.shape, 1))
    big = jnp.int32(rows * cols)
    if jnp.issubdtype(x.dtype, jnp.floating):
        nan_mask = x != x
        has_nan = _reduce2d(jnp.max, nan_mask.astype(jnp.float32)) > 0.0
        cand_mask = jnp.where(has_nan, nan_mask, x == m)
        key = jnp.where(has_nan, jnp.float32(jnp.inf), m.astype(jnp.float32))
    else:
        cand_mask = x == m
        key = m.astype(jnp.float32)
    local_idx = _reduce2d(jnp.min, jnp.where(cand_mask, flat_idx, big))
    # TODO(synk): index carried as int32 (torch uses int64) — overflows >2^31 elems.
    global_idx = i * (rows * cols) + local_idx

    @pl.when(i == 0)
    def _():
        max_sc[...] = key
        idx_sc[...] = global_idx

    @pl.when(i > 0)
    def _():
        better = key > max_sc[...]
        max_sc[...] = jnp.where(better, key, max_sc[...])
        idx_sc[...] = jnp.where(better, global_idx, idx_sc[...])

    o_ref[...] = idx_sc[...]


def _global_argmax(x):
    dt = x.dtype
    total = int(x.size)
    flat = x.reshape(-1)
    cols = _GA_LANES
    rows = pl.cdiv(total, cols)
    tile_r = _GA_TILE_ROWS if rows >= _GA_TILE_ROWS else _round_up(rows, 16)
    rows_p = _round_up(rows, tile_r)
    pad = rows_p * cols - total
    if pad:
        if jnp.issubdtype(dt, jnp.floating):
            fill = -jnp.inf
        else:
            fill = int(jnp.iinfo(dt).min)
        flat = jnp.pad(flat, (0, pad), constant_values=fill)
    x2 = flat.reshape(rows_p, cols)
    out = pl.pallas_call(
        _global_argmax_kernel,
        out_shape=jax.ShapeDtypeStruct((1, 1), jnp.int32),
        grid=(rows_p // tile_r,),
        in_specs=[pl.BlockSpec((tile_r, cols), lambda i: (i, 0))],
        out_specs=pl.BlockSpec((1, 1), lambda i: (0, 0)),
        scratch_shapes=[pltpu.VMEM((1, 1), jnp.float32),
                        pltpu.VMEM((1, 1), jnp.int32)],
        compiler_params=pltpu.CompilerParams(
            dimension_semantics=("arbitrary",)),
    )(x2)
    return out.reshape(())


# ----------------------------- module port --------------------------------- #

def _default_softmax_dim(ndim):
    # Mirrors torch.nn.functional._get_softmax_dim (dim=None deprecated path).
    return 0 if ndim in (0, 1, 3) else 1


class ArgMax:
    def __init__(self, dim=None):
        self.dim = dim

    def __call__(self, x):
        if self.dim is None:
            return _global_argmax(x)
        return _reduce_dim_call(_argmax_kernel, x, self.dim, out_kind='index')


class _AxisWise:
    def __init__(self, kernel, dim=None):
        self.kernel = kernel
        self.dim = dim

    def __call__(self, x):
        dim = self.dim if self.dim is not None else _default_softmax_dim(x.ndim)
        return _reduce_dim_call(self.kernel, x, dim, out_kind='same')


class _Elementwise:
    def __init__(self, kernel):
        self.kernel = kernel

    def __call__(self, x):
        return _elementwise_call(self.kernel, x)


class _Identity:
    def __call__(self, x):
        return x  # no kernel: identity is free


class Activation:
    """JAX/Pallas port of networks/mmseg/module.py::Activation."""

    def __init__(self, name, **params):
        if name is None or name == 'identity':
            self.activation = _Identity()
        elif name == 'sigmoid':
            self.activation = _Elementwise(_sigmoid_kernel)
        elif name == 'softmax2d':
            self.activation = _AxisWise(_softmax_kernel, dim=1, **params)
        elif name == 'softmax':
            self.activation = _AxisWise(_softmax_kernel, **params)
        elif name == 'logsoftmax':
            self.activation = _AxisWise(_logsoftmax_kernel, **params)
        elif name == 'tanh':
            self.activation = _Elementwise(_tanh_kernel)
        elif name == 'argmax':
            self.activation = ArgMax(**params)
        elif name == 'argmax2d':
            self.activation = ArgMax(dim=1, **params)
        elif callable(name):
            self.activation = name(**params)
        else:
            raise ValueError(
                'Activation should be callable/sigmoid/softmax/logsoftmax/tanh/'
                'None; got {}'.format(name))

    def __call__(self, x):
        return self.activation(x)


# ------------------------------- demo -------------------------------------- #

if __name__ == "__main__":
    key = jax.random.PRNGKey(0)
    # NCHW, matching the PyTorch convention of the source module.
    x = jax.random.normal(key, (2, 4, 16, 16), dtype=jnp.float32)

    results = {}
    for nm in ["identity", "sigmoid", "tanh", "softmax2d", "softmax",
               "logsoftmax", "argmax2d", "argmax"]:
        act = Activation(nm)
        results[nm] = jax.block_until_ready(act(x))

    # lane-reduction (last-axis) paths as well
    sm_last = jax.block_until_ready(Activation("softmax", dim=3)(x))
    am_last = jax.block_until_ready(Activation("argmax", dim=-1)(x))

    # correctness checks against plain JAX references
    assert jnp.allclose(results["identity"], x)
    assert jnp.allclose(results["sigmoid"], jax.nn.sigmoid(x), atol=1e-5)
    assert jnp.allclose(results["tanh"], jnp.tanh(x), atol=1e-5)
    assert jnp.allclose(results["softmax2d"], jax.nn.softmax(x, axis=1), atol=1e-5)
    assert jnp.allclose(results["softmax"], jax.nn.softmax(x, axis=1), atol=1e-5)
    assert jnp.allclose(results["logsoftmax"], jax.nn.log_softmax(x, axis=1), atol=1e-5)
    assert results["argmax2d"].shape == (2, 16, 16)
    assert jnp.array_equal(results["argmax2d"],
                           jnp.argmax(x, axis=1).astype(jnp.int32))
    assert results["argmax"].shape == ()
    assert int(results["argmax"]) == int(jnp.argmax(x))
    assert jnp.allclose(sm_last, jax.nn.softmax(x, axis=3), atol=1e-5)
    assert jnp.array_equal(am_last, jnp.argmax(x, axis=-1).astype(jnp.int32))

    print("KERNEL_OK")
</pallas_src>

<mosaic_0001>
module attributes {stable_mosaic.version = 11 : i64} {
  func.func @_sigmoid_kernel(%arg0: i32, %arg1: memref<16x512xf32, #tpu.memory_space<vmem>>, %arg2: memref<16x512xf32, #tpu.memory_space<vmem>>) attributes {dimension_semantics = [#tpu.dimension_semantics<parallel>], iteration_bounds = array<i64: 1>, scalar_prefetch = 0 : i64, scratch_operands = 0 : i64, tpu.core_type = #tpu.core_type<tc>, window_params = [{transform_indices = @transform_0, window_bounds = array<i64: 16, 512>}, {transform_indices = @transform_1, window_bounds = array<i64: 16, 512>}]} {
    %c0 = arith.constant 0 : index
    %c0_0 = arith.constant 0 : index
    %0 = vector.load %arg1[%c0, %c0_0] : memref<16x512xf32, #tpu.memory_space<vmem>>, vector<16x512xf32>
    %1 = arith.negf %0 : vector<16x512xf32>
    %2 = math.exp %1 : vector<16x512xf32>
    %cst = arith.constant 1.000000e+00 : f32
    %3 = vector.broadcast %cst : f32 to vector<16x512xf32>
    %4 = arith.addf %3, %2 : vector<16x512xf32>
    %5 = arith.divf %3, %4 : vector<16x512xf32>
    %c0_1 = arith.constant 0 : index
    %c0_2 = arith.constant 0 : index
    %6 = vector.load %arg2[%c0_1, %c0_2] : memref<16x512xf32, #tpu.memory_space<vmem>>, vector<16x512xf32>
    tpu.vector_store %arg2[%c0_1, %c0_2], %5 {strides = array<i32>} : memref<16x512xf32, #tpu.memory_space<vmem>>, vector<16x512xf32>,
    return
  }
  func.func @transform_0(%arg0: i32) -> (i32, i32) {
    %c0_i32 = arith.constant 0 : i32
    %c0_i32_0 = arith.constant 0 : i32
    return %arg0, %c0_i32 : i32, i32
  }
  func.func @transform_1(%arg0: i32) -> (i32, i32) {
    %c0_i32 = arith.constant 0 : i32
    %c0_i32_0 = arith.constant 0 : i32
    return %arg0, %c0_i32 : i32, i32
  }
}

</mosaic_0001>

<llo_original>
// kernel: tpu_custom_call.1
$region0: #{tpu_custom_call.1}
  #allocation0 [shape = 'u32[]', space=smem, size = 0x4, offset = 0x4, fixed_abs, tag = 'smem constant byte address 0x4 - core index']
  #allocation1 [shape = 'u32[144,128]{1,0:T(1,128)}', space=vmem, size = 0x12000, scoped, tag = 'internal scratch']
  %s0 = inlined_call_operand.hbm [shape: f32[16,512], index: 0, kind: input, shape index: {}]
  %s1 = inlined_call_operand.hbm [shape: f32[16,512], index: 1, kind: output, shape index: {}]
  %s2 = sld [smem:[#allocation0]]
  $region18: #{tpu_custom_call.1} parent=0
    _
  %s4 = ssub.s32 1, %s2
  %s5 = scalar_select 0, %s4, %s2
  $region1: #{tpu_custom_call.1} parent=0
    #allocation2 [shape = 'u8[32768]{0}', space=vmem, size = 0x8000, scoped, tag = 'input window, operand 0, single buffered']
    #allocation3 [shape = 's32[1]{0}', space=sflag, size = 0x4, scoped, tag = 'scoped memory for tpu_custom_call.1']
    #allocation4 [shape = 's32[1]{0}', space=sflag, size = 0x4, scoped, tag = 'scoped memory for tpu_custom_call.1']
    #allocation5 [shape = 'u8[32768]{0}', space=vmem, size = 0x8000, scoped, tag = 'output window, operand 0, single buffered']
    %6 = vsyncpa [#allocation3], 0
    %7 = vsyncpa [#allocation4], 0
    // Predicated region
    $region2: #{tpu_custom_call.1} parent=1 // pred_check
      _
    $region3: #{tpu_custom_call.1} parent=1 // pred_check_branch
      %9 = sbr.rel (0) target = $region5
    $region4: #{tpu_custom_call.1} parent=1 // pred_region
      %s11 = ssub.s32 1024, 1024
      %12 = vsyncadd [#allocation3], %s11
      %s13 = sshll.u32 [#allocation2], 4
      %s14 = int_to_ptr.vmem [resolvable:$true] %s13
      %19 = dma.hbm_to_vmem [thread:$0]  %s0, 1024, %s14, [#allocation3], 512, 512, 32
    $region5: #{tpu_custom_call.1} parent=1 // pred_fallthru
      _
    // Predicated region
    $region6: #{tpu_custom_call.1} parent=1 // pred_check
      _
    $region7: #{tpu_custom_call.1} parent=1 // pred_check_branch
      %21 = sbr.rel (0) target = $region9
    $region8: #{tpu_custom_call.1} parent=1 // pred_region
      %22 = dma.done [#allocation3], 1024
    $region9: #{tpu_custom_call.1} parent=1 // pred_fallthru
      _
    %v23 = vld [vmem:[#allocation2] sm:$0xff]
    %v24 = vld [vmem:[#allocation2 + $0x8] sm:$0xff]
    %v25 = vld [vmem:[#allocation2 + $0x10] sm:$0xff]
    %v26 = vld [vmem:[#allocation2 + $0x18] sm:$0xff]
    %v27 = vld [vmem:[#allocation2 + $0x20] sm:$0xff]
    %v28 = vld [vmem:[#allocation2 + $0x28] sm:$0xff]
    %v29 = vld [vmem:[#allocation2 + $0x30] sm:$0xff]
    %v30 = vld [vmem:[#allocation2 + $0x38] sm:$0xff]
    %v31 = vxor.u32 %v23, 2147483648
    %v32 = vxor.u32 %v24, 2147483648
    %v33 = vxor.u32 %v25, 2147483648
    %v34 = vxor.u32 %v26, 2147483648
    %v35 = vxor.u32 %v27, 2147483648
    %v36 = vxor.u32 %v28, 2147483648
    %v37 = vxor.u32 %v29, 2147483648
    %v38 = vxor.u32 %v30, 2147483648
    %v39 = vmul.f32 %v31, 1.442695
    %v40 = vpow.pop %v39
    %v41 = vmul.f32 %v32, 1.442695
    %v42 = vpow.pop %v41
    %v43 = vmul.f32 %v33, 1.442695
    %v44 = vpow.pop %v43
    %v45 = vmul.f32 %v34, 1.442695
    %v46 = vpow.pop %v45
    %v47 = vmul.f32 %v35, 1.442695
    %v48 = vpow.pop %v47
    %v49 = vmul.f32 %v36, 1.442695
    %v50 = vpow.pop %v49
    %v51 = vmul.f32 %v37, 1.442695
    %v52 = vpow.pop %v51
    %v53 = vmul.f32 %v38, 1.442695
    %v54 = vpow.pop %v53
    %v55 = vadd.f32 %v40, 1.0
    %v56 = vadd.f32 %v42, 1.0
    %v57 = vadd.f32 %v44, 1.0
    %v58 = vadd.f32 %v46, 1.0
    %v59 = vadd.f32 %v48, 1.0
    %v60 = vadd.f32 %v50, 1.0
    %v61 = vadd.f32 %v52, 1.0
    %v62 = vadd.f32 %v54, 1.0
    %v63 = vrcp.pop %v55
    %v64 = vmul.f32 1.0, %v63
    %v65 = vrcp.pop %v56
    %v66 = vmul.f32 1.0, %v65
    %v67 = vrcp.pop %v57
    %v68 = vmul.f32 1.0, %v67
    %v69 = vrcp.pop %v58
    %v70 = vmul.f32 1.0, %v69
    %v71 = vrcp.pop %v59
    %v72 = vmul.f32 1.0, %v71
    %v73 = vrcp.pop %v60
    %v74 = vmul.f32 1.0, %v73
    %v75 = vrcp.pop %v61
    %v76 = vmul.f32 1.0, %v75
    %v77 = vrcp.pop %v62
    %v78 = vmul.f32 1.0, %v77
    %79 = vst [vmem:[#allocation5] sm:$0xff] %v64
    %80 = vst [vmem:[#allocation5 + $0x8] sm:$0xff] %v66
    %81 = vst [vmem:[#allocation5 + $0x10] sm:$0xff] %v68
    %82 = vst [vmem:[#allocation5 + $0x18] sm:$0xff] %v70
    %83 = vst [vmem:[#allocation5 + $0x20] sm:$0xff] %v72
    %84 = vst [vmem:[#allocation5 + $0x28] sm:$0xff] %v74
    %85 = vst [vmem:[#allocation5 + $0x30] sm:$0xff] %v76
    %86 = vst [vmem:[#allocation5 + $0x38] sm:$0xff] %v78
    // Predicated region
    $region10: #{tpu_custom_call.1} parent=1 // pred_check
      _
    $region11: #{tpu_custom_call.1} parent=1 // pred_check_branch
      %88 = sbr.rel (0) target = $region13
    $region12: #{tpu_custom_call.1} parent=1 // pred_region
      %s90 = ssub.s32 1024, 1024
      %91 = vsyncadd [#allocation4], %s90
      %s92 = sshll.u32 [#allocation5], 4
      %s93 = int_to_ptr.vmem [resolvable:$true] %s92
      %98 = dma.vmem_to_hbm [thread:$0]  %s93, 1024, %s1, [#allocation4], 512, 512, 32
    $region13: #{tpu_custom_call.1} parent=1 // pred_fallthru
      _
    // Predicated region
    $region14: #{tpu_custom_call.1} parent=1 // pred_check
      _
    $region15: #{tpu_custom_call.1} parent=1 // pred_check_branch
      %100 = sbr.rel (0) target = $region17
    $region16: #{tpu_custom_call.1} parent=1 // pred_region
      %101 = dma.done [#allocation4], 1024
    $region17: #{tpu_custom_call.1} parent=1 // pred_fallthru
      _
    %102 = vsyncpa [#allocation3], 1
    %103 = vsyncpa [#allocation4], 1

</llo_original>
